<compile_context>
chip_gen: v5e
topology: v5e:2x2
jax: 0.10.0
libtpu: 0.0.40
codegen_flags: <defaults>
</compile_context>

<pallas_src>
import functools

import numpy as np
import jax
import jax.numpy as jnp
from jax.experimental import pallas as pl
from jax.experimental.pallas import tpu as pltpu


# ------------------------------ Fused kernel --------------------------------

def _fused_cnn_kernel(nb, hp, cw, a_ref, wconv_ref, bconv_ref, wfc_ref, bfc_ref, o_ref):
    """One NB-sample batch tile per grid step; all intermediates stay in VMEM/vregs.

    a_ref:     (1, Hp*NB, 4*(W+2)*Cin) bf16  rows ordered (pool-row h major, sample minor)
    wconv_ref: (4*(W+2)*Cin, 4*CW)     bf16  Toeplitz-structured conv weight
    bconv_ref: (1, CW)                 f32   conv bias in pooled column layout
    wfc_ref:   (Hp*CW, F)              bf16  FC weight, rows permuted to pooled layout
    bfc_ref:   (1, F)                  f32
    o_ref:     (1, NB, F)              f32
    """
    a = a_ref[0]                                                     # (Hp*NB, K) bf16
    # Conv as ONE lane-dense matmul; output columns ordered [pool_pos g, cout, w'].
    y = jnp.dot(a, wconv_ref[...], preferred_element_type=jnp.float32)  # (Hp*NB, 4*CW)

    # 2x2 maxpool == elementwise max of four 128-lane-aligned column blocks (pure VPU).
    pooled = jnp.maximum(jnp.maximum(y[:, 0 * cw:1 * cw], y[:, 1 * cw:2 * cw]),
                         jnp.maximum(y[:, 2 * cw:3 * cw], y[:, 3 * cw:4 * cw]))

    # Bias + ReLU commute with the maxpool (monotone; bias identical across the four
    # taps), so apply them once on the CW-wide pooled slab instead of the 4*CW slab.
    p = jnp.maximum(pooled + bconv_ref[...], 0.0).astype(jnp.bfloat16)   # (Hp*NB, CW)

    # FC: contract over (h, c).  Rows are h-major, so each h-chunk is a contiguous
    # (NB, CW) block -> Hp small MXU matmuls accumulated in f32 vregs.
    f = o_ref.shape[-1]
    acc = jnp.broadcast_to(bfc_ref[...], (nb, f))                    # start from bias
    for h in range(hp):                                              # static, unrolled
        acc = acc + jnp.dot(p[h * nb:(h + 1) * nb, :],
                            wfc_ref[h * cw:(h + 1) * cw, :],
                            preferred_element_type=jnp.float32)
    o_ref[0] = acc


# --------------------- Static weight/layout preparation ----------------------

def prepare_params(conv_w, conv_b, fc_w, fc_b, H, W):
    """Bake im2col, pooling-window and PyTorch-flatten layout into static weights."""
    Cout, Cin, KH, KW = conv_w.shape
    F = fc_w.shape[0]
    Hp, Wp = H // 2, W // 2
    row_w = (W + 2) * Cin                 # one padded input row, channels-last
    K = (KH + 1) * row_w                  # 4 padded-row slabs per pool row
    CW = Cout * Wp                        # pooled lane width (= 128 here)

    # Toeplitz-structured conv weight: Y[r, col] = conv(h=2r+ph, w=2wq+pw, co) with
    # col = (ph*2+pw)*CW + co*Wp + wq and
    # A[r, (ph+ki)*row_w + (2wq+pw+kj)*Cin + c] = x_pad[2r+ph+ki, 2wq+pw+kj, c].
    ph, pw, ki, kj, wq, co, c = np.indices((2, 2, KH, KW, Wp, Cout, Cin))
    rows = (ph + ki) * row_w + (2 * wq + pw + kj) * Cin + c
    cols = (ph * 2 + pw) * CW + co * Wp + wq
    vals = conv_w[co, c, ki, kj]                       # gather, same shape as rows/cols
    wconv = jnp.zeros((K, 4 * CW), jnp.float32).at[rows, cols].set(vals)
    wconv = wconv.astype(jnp.bfloat16)

    # Conv bias in the POOLED column layout (co*Wp + w); applied post-pool in f32.
    bconv_row = (jnp.broadcast_to(conv_b[:, None], (Cout, Wp))
                    .reshape(1, CW).astype(jnp.float32))

    # FC weight permuted so the pooled (h-major, lane = co*Wp+w) slab feeds it directly:
    # wfc[h*CW + co*Wp + w, f] = fc_w[f, co*Hp*Wp + h*Wp + w]   (PyTorch flatten order)
    wfc = (fc_w.reshape(F, Cout, Hp, Wp)
               .transpose(2, 1, 3, 0)
               .reshape(Hp * CW, F)
               .astype(jnp.bfloat16))
    bfc_row = fc_b.reshape(1, F).astype(jnp.float32)

    return wconv, bconv_row, wfc, bfc_row


# ------------------------------ Forward pass ---------------------------------

@jax.jit
def cnn_forward(x_nchw, wconv, bconv_row, wfc, bfc_row):
    """Fused CNN forward. x_nchw: (N, Cin, H, W) float32."""
    N, Cin, H, W = x_nchw.shape
    Hp = H // 2
    K, CW4 = wconv.shape
    CW = CW4 // 4
    F = wfc.shape[1]
    row_w = (W + 2) * Cin
    num_slabs = K // row_w                # = 4 (pool stride 2 + kernel 3 - 1)

    NB = min(8, N)                        # samples per grid step
    Npad = ((N + NB - 1) // NB) * NB
    T = Npad // NB

    # Tiny activation-side glue: NCHW -> padded channels-last rows -> pool-row slabs.
    xt = jnp.transpose(x_nchw, (0, 2, 3, 1))                         # (N, H, W, Cin)
    xpad = jnp.pad(xt, ((0, 0), (1, 1), (1, 1), (0, 0)))             # (N, H+2, W+2, Cin)
    x2 = xpad.reshape(N, H + 2, row_w)                               # (N, H+2, row_w)
    a = jnp.concatenate([x2[:, s::2, :][:, :Hp, :] for s in range(num_slabs)],
                        axis=-1)                                     # (N, Hp, K)
    if Npad != N:
        a = jnp.pad(a, ((0, Npad - N), (0, 0), (0, 0)))
    # (T, NB, Hp, K) -> (T, Hp, NB, K) -> (T, Hp*NB, K): h-major rows inside each tile.
    a = (a.reshape(T, NB, Hp, K)
          .transpose(0, 2, 1, 3)
          .reshape(T, Hp * NB, K)
          .astype(jnp.bfloat16))

    kernel = functools.partial(_fused_cnn_kernel, NB, Hp, CW)
    out = pl.pallas_call(
        kernel,
        grid=(T,),
        in_specs=[
            pl.BlockSpec((1, Hp * NB, K), lambda t: (t, 0, 0)),
            pl.BlockSpec((K, CW4), lambda t: (0, 0)),
            pl.BlockSpec((1, CW), lambda t: (0, 0)),
            pl.BlockSpec((Hp * CW, F), lambda t: (0, 0)),
            pl.BlockSpec((1, F), lambda t: (0, 0)),
        ],
        out_specs=pl.BlockSpec((1, NB, F), lambda t: (t, 0, 0)),
        out_shape=jax.ShapeDtypeStruct((T, NB, F), jnp.float32),
        compiler_params=pltpu.CompilerParams(
            dimension_semantics=("parallel",)),     # v7x: 2 TCs split the batch tiles
    )(a, wconv, bconv_row, wfc, bfc_row)
    return out.reshape(Npad, F)[:N]


# --------------------------- Pure-JAX reference ------------------------------

def ref_forward(x_nchw, conv_w, conv_b, fc_w, fc_b):
    out = jax.lax.conv_general_dilated(
        x_nchw, conv_w, window_strides=(1, 1), padding=((1, 1), (1, 1)),
        dimension_numbers=("NCHW", "OIHW", "NCHW"))
    out = out + conv_b.reshape(1, -1, 1, 1)
    out = jnp.maximum(out, 0.0)
    out = jax.lax.reduce_window(out, -jnp.inf, jax.lax.max,
                                (1, 1, 2, 2), (1, 1, 2, 2), "VALID")
    out = out.reshape(out.shape[0], -1)
    return out @ fc_w.T + fc_b


# ---------------------------------- Main -------------------------------------

if __name__ == "__main__":
    # Shapes consistent with the module: batch=2, input_channels=4,
    # feature_map_size=16  ->  fc_input_size = 16 * 8 * 8 = 1024, fc out = 128.
    N, Cin, H = 2, 4, 16
    Cout, F = 16, 128
    fc_in = Cout * (H // 2) * (H // 2)

    key = jax.random.PRNGKey(0)
    k1, k2, k3, k4, k5 = jax.random.split(key, 5)
    x = jax.random.normal(k1, (N, Cin, H, H), dtype=jnp.float32)
    conv_w = 0.1 * jax.random.normal(k2, (Cout, Cin, 3, 3), dtype=jnp.float32)
    conv_b = 0.1 * jax.random.normal(k3, (Cout,), dtype=jnp.float32)
    fc_w = 0.02 * jax.random.normal(k4, (F, fc_in), dtype=jnp.float32)
    fc_b = 0.02 * jax.random.normal(k5, (F,), dtype=jnp.float32)

    # Weight-side layout work is done once, off the per-call critical path.
    params = prepare_params(conv_w, conv_b, fc_w, fc_b, H, H)

    out = cnn_forward(x, *params)
    out = jax.block_until_ready(out)

    ref = ref_forward(x, conv_w, conv_b, fc_w, fc_b)
    assert out.shape == (N, F), out.shape
    max_err = float(jnp.max(jnp.abs(out - ref)))
    # bf16 MXU operands (f32 accumulation) => relaxed tolerance vs the f32 reference.
    assert jnp.allclose(out, ref, atol=2e-2, rtol=2e-2), max_err

    print("KERNEL_OK")
</pallas_src>

<mosaic_0001>
module attributes {stable_mosaic.version = 11 : i64} {
  func.func @_fused_cnn_kernel(%arg0: i32, %arg1: memref<1x16x288xbf16, #tpu.memory_space<vmem>>, %arg2: memref<288x512xbf16, #tpu.memory_space<vmem>>, %arg3: memref<1x128xf32, #tpu.memory_space<vmem>>, %arg4: memref<1024x128xbf16, #tpu.memory_space<vmem>>, %arg5: memref<1x128xf32, #tpu.memory_space<vmem>>, %arg6: memref<1x2x128xf32, #tpu.memory_space<vmem>>) attributes {dimension_semantics = [#tpu.dimension_semantics<parallel>], iteration_bounds = array<i64: 1>, scalar_prefetch = 0 : i64, scratch_operands = 0 : i64, tpu.core_type = #tpu.core_type<tc>, window_params = [{transform_indices = @transform_0, window_bounds = array<i64: 1, 16, 288>}, {pipeline_mode = #tpu.pipeline_mode<synchronous>, transform_indices = @transform_1, window_bounds = array<i64: 288, 512>}, {pipeline_mode = #tpu.pipeline_mode<synchronous>, transform_indices = @transform_2, window_bounds = array<i64: 1, 128>}, {pipeline_mode = #tpu.pipeline_mode<synchronous>, transform_indices = @transform_3, window_bounds = array<i64: 1024, 128>}, {pipeline_mode = #tpu.pipeline_mode<synchronous>, transform_indices = @transform_4, window_bounds = array<i64: 1, 128>}, {transform_indices = @transform_5, window_bounds = array<i64: 1, 2, 128>}]} {
    %c0 = arith.constant 0 : index
    %c0_0 = arith.constant 0 : index
    %c0_1 = arith.constant 0 : index
    %0 = vector.load %arg1[%c0, %c0_0, %c0_1] : memref<1x16x288xbf16, #tpu.memory_space<vmem>>, vector<1x16x288xbf16>
    %1 = vector.shape_cast %0 : vector<1x16x288xbf16> to vector<16x288xbf16>
    %c0_2 = arith.constant 0 : index
    %c0_3 = arith.constant 0 : index
    %2 = vector.load %arg2[%c0_2, %c0_3] : memref<288x512xbf16, #tpu.memory_space<vmem>>, vector<288x512xbf16>
    %cst = arith.constant dense<0.000000e+00> : vector<16x512xf32>
    %3 = tpu.matmul %1, %2, %cst {dimension_numbers = #tpu.dot_dimension_numbers<[1], [0], [0], [1], [0, 0, 1, 1], [], []>} : vector<16x288xbf16>, vector<288x512xbf16>, vector<16x512xf32> -> vector<16x512xf32>
    %4 = vector.extract_strided_slice %3 {offsets = [0, 0], sizes = [16, 128], strides = [1, 1]} : vector<16x512xf32> to vector<16x128xf32>
    %5 = vector.extract_strided_slice %3 {offsets = [0, 128], sizes = [16, 128], strides = [1, 1]} : vector<16x512xf32> to vector<16x128xf32>
    %6 = arith.maximumf %4, %5 : vector<16x128xf32>
    %7 = vector.extract_strided_slice %3 {offsets = [0, 256], sizes = [16, 128], strides = [1, 1]} : vector<16x512xf32> to vector<16x128xf32>
    %8 = vector.extract_strided_slice %3 {offsets = [0, 384], sizes = [16, 128], strides = [1, 1]} : vector<16x512xf32> to vector<16x128xf32>
    %9 = arith.maximumf %7, %8 : vector<16x128xf32>
    %10 = arith.maximumf %6, %9 : vector<16x128xf32>
    %c0_4 = arith.constant 0 : index
    %c0_5 = arith.constant 0 : index
    %11 = vector.load %arg3[%c0_4, %c0_5] : memref<1x128xf32, #tpu.memory_space<vmem>>, vector<1x128xf32>
    %12 = vector.broadcast %11 : vector<1x128xf32> to vector<16x128xf32>
    %13 = arith.addf %10, %12 : vector<16x128xf32>
    %cst_6 = arith.constant 0.000000e+00 : f32
    %14 = vector.broadcast %cst_6 : f32 to vector<16x128xf32>
    %15 = arith.maximumf %13, %14 : vector<16x128xf32>
    %16 = arith.truncf %15 : vector<16x128xf32> to vector<16x128xbf16>
    %c0_7 = arith.constant 0 : index
    %c0_8 = arith.constant 0 : index
    %17 = vector.load %arg5[%c0_7, %c0_8] : memref<1x128xf32, #tpu.memory_space<vmem>>, vector<1x128xf32>
    %18 = vector.shape_cast %17 : vector<1x128xf32> to vector<1x128xf32>
    %19 = vector.broadcast %18 : vector<1x128xf32> to vector<2x128xf32>
    %20 = vector.extract_strided_slice %16 {offsets = [0, 0], sizes = [2, 128], strides = [1, 1]} : vector<16x128xbf16> to vector<2x128xbf16>
    %c0_9 = arith.constant 0 : index
    %c0_10 = arith.constant 0 : index
    %21 = vector.load %arg4[%c0_9, %c0_10] : memref<1024x128xbf16, #tpu.memory_space<vmem>>, vector<128x128xbf16>
    %cst_11 = arith.constant dense<0.000000e+00> : vector<2x128xf32>
    %22 = tpu.matmul %20, %21, %cst_11 {dimension_numbers = #tpu.dot_dimension_numbers<[1], [0], [0], [1], [0, 0, 1, 1], [], []>} : vector<2x128xbf16>, vector<128x128xbf16>, vector<2x128xf32> -> vector<2x128xf32>
    %23 = arith.addf %19, %22 : vector<2x128xf32>
    %24 = vector.extract_strided_slice %16 {offsets = [2, 0], sizes = [2, 128], strides = [1, 1]} : vector<16x128xbf16> to vector<2x128xbf16>
    %c128 = arith.constant 128 : index
    %c0_12 = arith.constant 0 : index
    %25 = vector.load %arg4[%c128, %c0_12] : memref<1024x128xbf16, #tpu.memory_space<vmem>>, vector<128x128xbf16>
    %cst_13 = arith.constant dense<0.000000e+00> : vector<2x128xf32>
    %26 = tpu.matmul %24, %25, %cst_13 {dimension_numbers = #tpu.dot_dimension_numbers<[1], [0], [0], [1], [0, 0, 1, 1], [], []>} : vector<2x128xbf16>, vector<128x128xbf16>, vector<2x128xf32> -> vector<2x128xf32>
    %27 = arith.addf %23, %26 : vector<2x128xf32>
    %28 = vector.extract_strided_slice %16 {offsets = [4, 0], sizes = [2, 128], strides = [1, 1]} : vector<16x128xbf16> to vector<2x128xbf16>
    %c256 = arith.constant 256 : index
    %c0_14 = arith.constant 0 : index
    %29 = vector.load %arg4[%c256, %c0_14] : memref<1024x128xbf16, #tpu.memory_space<vmem>>, vector<128x128xbf16>
    %cst_15 = arith.constant dense<0.000000e+00> : vector<2x128xf32>
    %30 = tpu.matmul %28, %29, %cst_15 {dimension_numbers = #tpu.dot_dimension_numbers<[1], [0], [0], [1], [0, 0, 1, 1], [], []>} : vector<2x128xbf16>, vector<128x128xbf16>, vector<2x128xf32> -> vector<2x128xf32>
    %31 = arith.addf %27, %30 : vector<2x128xf32>
    %32 = vector.extract_strided_slice %16 {offsets = [6, 0], sizes = [2, 128], strides = [1, 1]} : vector<16x128xbf16> to vector<2x128xbf16>
    %c384 = arith.constant 384 : index
    %c0_16 = arith.constant 0 : index
    %33 = vector.load %arg4[%c384, %c0_16] : memref<1024x128xbf16, #tpu.memory_space<vmem>>, vector<128x128xbf16>
    %cst_17 = arith.constant dense<0.000000e+00> : vector<2x128xf32>
    %34 = tpu.matmul %32, %33, %cst_17 {dimension_numbers = #tpu.dot_dimension_numbers<[1], [0], [0], [1], [0, 0, 1, 1], [], []>} : vector<2x128xbf16>, vector<128x128xbf16>, vector<2x128xf32> -> vector<2x128xf32>
    %35 = arith.addf %31, %34 : vector<2x128xf32>
    %36 = vector.extract_strided_slice %16 {offsets = [8, 0], sizes = [2, 128], strides = [1, 1]} : vector<16x128xbf16> to vector<2x128xbf16>
    %c512 = arith.constant 512 : index
    %c0_18 = arith.constant 0 : index
    %37 = vector.load %arg4[%c512, %c0_18] : memref<1024x128xbf16, #tpu.memory_space<vmem>>, vector<128x128xbf16>
    %cst_19 = arith.constant dense<0.000000e+00> : vector<2x128xf32>
    %38 = tpu.matmul %36, %37, %cst_19 {dimension_numbers = #tpu.dot_dimension_numbers<[1], [0], [0], [1], [0, 0, 1, 1], [], []>} : vector<2x128xbf16>, vector<128x128xbf16>, vector<2x128xf32> -> vector<2x128xf32>
    %39 = arith.addf %35, %38 : vector<2x128xf32>
    %40 = vector.extract_strided_slice %16 {offsets = [10, 0], sizes = [2, 128], strides = [1, 1]} : vector<16x128xbf16> to vector<2x128xbf16>
    %c640 = arith.constant 640 : index
    %c0_20 = arith.constant 0 : index
    %41 = vector.load %arg4[%c640, %c0_20] : memref<1024x128xbf16, #tpu.memory_space<vmem>>, vector<128x128xbf16>
    %cst_21 = arith.constant dense<0.000000e+00> : vector<2x128xf32>
    %42 = tpu.matmul %40, %41, %cst_21 {dimension_numbers = #tpu.dot_dimension_numbers<[1], [0], [0], [1], [0, 0, 1, 1], [], []>} : vector<2x128xbf16>, vector<128x128xbf16>, vector<2x128xf32> -> vector<2x128xf32>
    %43 = arith.addf %39, %42 : vector<2x128xf32>
    %44 = vector.extract_strided_slice %16 {offsets = [12, 0], sizes = [2, 128], strides = [1, 1]} : vector<16x128xbf16> to vector<2x128xbf16>
    %c768 = arith.constant 768 : index
    %c0_22 = arith.constant 0 : index
    %45 = vector.load %arg4[%c768, %c0_22] : memref<1024x128xbf16, #tpu.memory_space<vmem>>, vector<128x128xbf16>
    %cst_23 = arith.constant dense<0.000000e+00> : vector<2x128xf32>
    %46 = tpu.matmul %44, %45, %cst_23 {dimension_numbers = #tpu.dot_dimension_numbers<[1], [0], [0], [1], [0, 0, 1, 1], [], []>} : vector<2x128xbf16>, vector<128x128xbf16>, vector<2x128xf32> -> vector<2x128xf32>
    %47 = arith.addf %43, %46 : vector<2x128xf32>
    %48 = vector.extract_strided_slice %16 {offsets = [14, 0], sizes = [2, 128], strides = [1, 1]} : vector<16x128xbf16> to vector<2x128xbf16>
    %c896 = arith.constant 896 : index
    %c0_24 = arith.constant 0 : index
    %49 = vector.load %arg4[%c896, %c0_24] : memref<1024x128xbf16, #tpu.memory_space<vmem>>, vector<128x128xbf16>
    %cst_25 = arith.constant dense<0.000000e+00> : vector<2x128xf32>
    %50 = tpu.matmul %48, %49, %cst_25 {dimension_numbers = #tpu.dot_dimension_numbers<[1], [0], [0], [1], [0, 0, 1, 1], [], []>} : vector<2x128xbf16>, vector<128x128xbf16>, vector<2x128xf32> -> vector<2x128xf32>
    %51 = arith.addf %47, %50 : vector<2x128xf32>
    %c0_26 = arith.constant 0 : index
    %c0_27 = arith.constant 0 : index
    %c0_28 = arith.constant 0 : index
    %52 = vector.load %arg6[%c0_26, %c0_27, %c0_28] : memref<1x2x128xf32, #tpu.memory_space<vmem>>, vector<1x2x128xf32>
    %53 = vector.shape_cast %52 : vector<1x2x128xf32> to vector<2x128xf32>
    %54 = vector.shape_cast %51 : vector<2x128xf32> to vector<1x2x128xf32>
    tpu.vector_store %arg6[%c0_26, %c0_27, %c0_28], %54 {strides = array<i32>} : memref<1x2x128xf32, #tpu.memory_space<vmem>>, vector<1x2x128xf32>,
    return
  }
  func.func @transform_0(%arg0: i32) -> (i32, i32, i32) {
    %c0_i32 = arith.constant 0 : i32
    %c0_i32_0 = arith.constant 0 : i32
    %c0_i32_1 = arith.constant 0 : i32
    return %arg0, %c0_i32, %c0_i32_0 : i32, i32, i32
  }
  func.func @transform_1(%arg0: i32) -> (i32, i32) {
    %c0_i32 = arith.constant 0 : i32
    %c0_i32_0 = arith.constant 0 : i32
    %c0_i32_1 = arith.constant 0 : i32
    return %c0_i32, %c0_i32_0 : i32, i32
  }
  func.func @transform_2(%arg0: i32) -> (i32, i32) {
    %c0_i32 = arith.constant 0 : i32
    %c0_i32_0 = arith.constant 0 : i32
    %c0_i32_1 = arith.constant 0 : i32
    return %c0_i32, %c0_i32_0 : i32, i32
  }
  func.func @transform_3(%arg0: i32) -> (i32, i32) {
    %c0_i32 = arith.constant 0 : i32
    %c0_i32_0 = arith.constant 0 : i32
    %c0_i32_1 = arith.constant 0 : i32
    return %c0_i32, %c0_i32_0 : i32, i32
  }
  func.func @transform_4(%arg0: i32) -> (i32, i32) {
    %c0_i32 = arith.constant 0 : i32
    %c0_i32_0 = arith.constant 0 : i32
    %c0_i32_1 = arith.constant 0 : i32
    return %c0_i32, %c0_i32_0 : i32, i32
  }
  func.func @transform_5(%arg0: i32) -> (i32, i32, i32) {
    %c0_i32 = arith.constant 0 : i32
    %c0_i32_0 = arith.constant 0 : i32
    %c0_i32_1 = arith.constant 0 : i32
    return %arg0, %c0_i32, %c0_i32_0 : i32, i32, i32
  }
}

</mosaic_0001>

<llo_original>
// kernel: cnn_forward.1
$region0: #{cnn_forward.1}
  #allocation0 [shape = 'u32[]', space=smem, size = 0x4, offset = 0x4, fixed_abs, tag = 'smem constant byte address 0x4 - core index']
  #allocation1 [shape = 'u32[72,128]{1,0:T(1,128)}', space=vmem, size = 0x9000, scoped, tag = 'internal scratch']
  %s0 = inlined_call_operand.vmem [shape: bf16[1,16,288], index: 0, kind: input, shape index: {}]
  %s1 = inlined_call_operand.vmem [shape: bf16[288,512], index: 1, kind: input, shape index: {}]
  %s2 = inlined_call_operand.vmem [shape: f32[1,128], index: 2, kind: input, shape index: {}]
  %s3 = inlined_call_operand.vmem [shape: bf16[1024,128], index: 3, kind: input, shape index: {}]
  %s4 = inlined_call_operand.vmem [shape: f32[1,128], index: 4, kind: input, shape index: {}]
  %s5 = inlined_call_operand.hbm [shape: f32[1,2,128], index: 5, kind: output, shape index: {}]
  %s6 = sld [smem:[#allocation0]]
  $region30: #{cnn_forward.1} parent=0
    _
  %s8 = ssub.s32 1, %s6
  %s9 = scalar_select 0, %s8, %s6
  $region1: #{cnn_forward.1} parent=0
    #allocation2 [shape = 'u8[1024]{0}', space=vmem, size = 0x400, scoped, tag = 'output window, operand 0, single buffered']
    #allocation3 [shape = 's32[1]{0}', space=sflag, size = 0x4, scoped, tag = 'scoped memory for cnn_forward.1']
    %10 = vsyncpa [#allocation3], 0
    // Predicated region
    $region2: #{cnn_forward.1} parent=1 // pred_check
      _
    $region3: #{cnn_forward.1} parent=1 // pred_check_branch
      %12 = sbr.rel (0) target = $region5
    $region4: #{cnn_forward.1} parent=1 // pred_region
      _
    $region5: #{cnn_forward.1} parent=1 // pred_fallthru
      _
    // Predicated region
    $region6: #{cnn_forward.1} parent=1 // pred_check
      _
    $region7: #{cnn_forward.1} parent=1 // pred_check_branch
      %14 = sbr.rel (0) target = $region9
    $region8: #{cnn_forward.1} parent=1 // pred_region
      _
    $region9: #{cnn_forward.1} parent=1 // pred_fallthru
      _
    // Predicated region
    $region10: #{cnn_forward.1} parent=1 // pred_check
      _
    $region11: #{cnn_forward.1} parent=1 // pred_check_branch
      %16 = sbr.rel (0) target = $region13
    $region12: #{cnn_forward.1} parent=1 // pred_region
      _
    $region13: #{cnn_forward.1} parent=1 // pred_fallthru
      _
    // Predicated region
    $region14: #{cnn_forward.1} parent=1 // pred_check
      _
    $region15: #{cnn_forward.1} parent=1 // pred_check_branch
      %18 = sbr.rel (0) target = $region17
    $region16: #{cnn_forward.1} parent=1 // pred_region
      _
    $region17: #{cnn_forward.1} parent=1 // pred_fallthru
      _
    // Predicated region
    $region18: #{cnn_forward.1} parent=1 // pred_check
      _
    $region19: #{cnn_forward.1} parent=1 // pred_check_branch
      %20 = sbr.rel (0) target = $region21
    $region20: #{cnn_forward.1} parent=1 // pred_region
      _
    $region21: #{cnn_forward.1} parent=1 // pred_fallthru
      _
    %v22 = vld [vmem:[%s0] sm:$0xff]
    %v23 = vld [vmem:[%s0 + $0x8] sm:$0xf]
    %v24 = vld [vmem:[%s0 + $0xc] sm:$0xff]
    %v25 = vld [vmem:[%s0 + $0x14] sm:$0xf]
    %v26 = vld [vmem:[%s1] sm:$0xff]
    %v27 = vld [vmem:[%s1 + $0x8] sm:$0xff]
    %v28 = vld [vmem:[%s1 + $0x10] sm:$0xff]
    %v29 = vld [vmem:[%s1 + $0x18] sm:$0xff]
    %v30 = vld [vmem:[%s1 + $0x20] sm:$0xff]
    %v31 = vld [vmem:[%s1 + $0x28] sm:$0xff]
    %v32 = vld [vmem:[%s1 + $0x30] sm:$0xff]
    %v33 = vld [vmem:[%s1 + $0x38] sm:$0xff]
    %v34 = vld [vmem:[%s1 + $0x40] sm:$0xff]
    %v35 = vld [vmem:[%s1 + $0x48] sm:$0xff]
    %v36 = vld [vmem:[%s1 + $0x50] sm:$0xff]
    %v37 = vld [vmem:[%s1 + $0x58] sm:$0xff]
    %v38 = vld [vmem:[%s1 + $0x60] sm:$0xff]
    %v39 = vld [vmem:[%s1 + $0x68] sm:$0xff]
    %v40 = vld [vmem:[%s1 + $0x70] sm:$0xff]
    %v41 = vld [vmem:[%s1 + $0x78] sm:$0xff]
    %v42 = vld [vmem:[%s1 + $0x80] sm:$0xff]
    %v43 = vld [vmem:[%s1 + $0x88] sm:$0xff]
    %v44 = vld [vmem:[%s1 + $0x90] sm:$0xff]
    %v45 = vld [vmem:[%s1 + $0x98] sm:$0xff]
    %v46 = vld [vmem:[%s1 + $0xa0] sm:$0xff]
    %v47 = vld [vmem:[%s1 + $0xa8] sm:$0xff]
    %v48 = vld [vmem:[%s1 + $0xb0] sm:$0xff]
    %v49 = vld [vmem:[%s1 + $0xb8] sm:$0xff]
    %v50 = vld [vmem:[%s1 + $0xc0] sm:$0xff]
    %v51 = vld [vmem:[%s1 + $0xc8] sm:$0xff]
    %v52 = vld [vmem:[%s1 + $0xd0] sm:$0xff]
    %v53 = vld [vmem:[%s1 + $0xd8] sm:$0xff]
    %v54 = vld [vmem:[%s1 + $0xe0] sm:$0xff]
    %v55 = vld [vmem:[%s1 + $0xe8] sm:$0xff]
    %v56 = vld [vmem:[%s1 + $0xf0] sm:$0xff]
    %v57 = vld [vmem:[%s1 + $0xf8] sm:$0xff]
    %v58 = vld [vmem:[%s1 + $0x100] sm:$0xff]
    %v59 = vld [vmem:[%s1 + $0x108] sm:$0xff]
    %v60 = vld [vmem:[%s1 + $0x110] sm:$0xff]
    %v61 = vld [vmem:[%s1 + $0x118] sm:$0xff]
    %v62 = vld [vmem:[%s1 + $0x120] sm:$0xff]
    %v63 = vld [vmem:[%s1 + $0x128] sm:$0xff]
    %v64 = vld [vmem:[%s1 + $0x130] sm:$0xff]
    %v65 = vld [vmem:[%s1 + $0x138] sm:$0xff]
    %v66 = vld [vmem:[%s1 + $0x140] sm:$0xff]
    %v67 = vld [vmem:[%s1 + $0x148] sm:$0xff]
    %v68 = vld [vmem:[%s1 + $0x150] sm:$0xff]
    %v69 = vld [vmem:[%s1 + $0x158] sm:$0xff]
    %v70 = vld [vmem:[%s1 + $0x160] sm:$0xff]
    %v71 = vld [vmem:[%s1 + $0x168] sm:$0xff]
    %v72 = vld [vmem:[%s1 + $0x170] sm:$0xff]
    %v73 = vld [vmem:[%s1 + $0x178] sm:$0xff]
    %v74 = vld [vmem:[%s1 + $0x180] sm:$0xff]
    %v75 = vld [vmem:[%s1 + $0x188] sm:$0xff]
    %v76 = vld [vmem:[%s1 + $0x190] sm:$0xff]
    %v77 = vld [vmem:[%s1 + $0x198] sm:$0xff]
    %v78 = vld [vmem:[%s1 + $0x1a0] sm:$0xff]
    %v79 = vld [vmem:[%s1 + $0x1a8] sm:$0xff]
    %v80 = vld [vmem:[%s1 + $0x1b0] sm:$0xff]
    %v81 = vld [vmem:[%s1 + $0x1b8] sm:$0xff]
    %v82 = vld [vmem:[%s1 + $0x1c0] sm:$0xff]
    %v83 = vld [vmem:[%s1 + $0x1c8] sm:$0xff]
    %v84 = vld [vmem:[%s1 + $0x1d0] sm:$0xff]
    %v85 = vld [vmem:[%s1 + $0x1d8] sm:$0xff]
    %v86 = vld [vmem:[%s1 + $0x1e0] sm:$0xff]
    %v87 = vld [vmem:[%s1 + $0x1e8] sm:$0xff]
    %v88 = vld [vmem:[%s1 + $0x1f0] sm:$0xff]
    %v89 = vld [vmem:[%s1 + $0x1f8] sm:$0xff]
    %v90 = vld [vmem:[%s1 + $0x200] sm:$0xff]
    %v91 = vld [vmem:[%s1 + $0x208] sm:$0xff]
    %v92 = vld [vmem:[%s1 + $0x210] sm:$0xff]
    %v93 = vld [vmem:[%s1 + $0x218] sm:$0xff]
    %v94 = vld [vmem:[%s1 + $0x220] sm:$0xff]
    %v95 = vld [vmem:[%s1 + $0x228] sm:$0xff]
    %v96 = vld [vmem:[%s1 + $0x230] sm:$0xff]
    %v97 = vld [vmem:[%s1 + $0x238] sm:$0xff]
    %v102 = vunpack.c.l.b16 %v22
    %v103 = vunpack.c.h.b16 %v22
    %v104 = vunpack.c.l.b16 %v23
    %v105 = vunpack.c.l.b16 %v24
    %v106 = vunpack.c.h.b16 %v24
    %v107 = vunpack.c.l.b16 %v25
    %v108 = vpack.c.b16 %v105, %v102
    %v109 = vpack.c.b16 %v106, %v103
    %v110 = vpack.c.b16 %v107, %v104
    %v185 = vunpack.c.l.b16 %v26
    %v186 = vunpack.c.h.b16 %v26
    %v187 = vunpack.c.l.b16 %v27
    %v188 = vunpack.c.h.b16 %v27
    %v189 = vunpack.c.l.b16 %v28
    %v190 = vunpack.c.h.b16 %v28
    %v191 = vunpack.c.l.b16 %v29
    %v192 = vunpack.c.h.b16 %v29
    %v193 = vunpack.c.l.b16 %v30
    %v194 = vunpack.c.h.b16 %v30
    %v195 = vunpack.c.l.b16 %v31
    %v196 = vunpack.c.h.b16 %v31
    %v197 = vunpack.c.l.b16 %v32
    %v198 = vunpack.c.h.b16 %v32
    %v199 = vunpack.c.l.b16 %v33
    %v200 = vunpack.c.h.b16 %v33
    %v201 = vunpack.c.l.b16 %v34
    %v202 = vunpack.c.h.b16 %v34
    %v203 = vunpack.c.l.b16 %v35
    %v204 = vunpack.c.h.b16 %v35
    %v205 = vunpack.c.l.b16 %v36
    %v206 = vunpack.c.h.b16 %v36
    %v207 = vunpack.c.l.b16 %v37
    %v208 = vunpack.c.h.b16 %v37
    %v209 = vunpack.c.l.b16 %v38
    %v210 = vunpack.c.h.b16 %v38
    %v211 = vunpack.c.l.b16 %v39
    %v212 = vunpack.c.h.b16 %v39
    %v213 = vunpack.c.l.b16 %v40
    %v214 = vunpack.c.h.b16 %v40
    %v215 = vunpack.c.l.b16 %v41
    %v216 = vunpack.c.h.b16 %v41
    %v217 = vunpack.c.l.b16 %v42
    %v218 = vunpack.c.h.b16 %v42
    %v219 = vunpack.c.l.b16 %v43
    %v220 = vunpack.c.h.b16 %v43
    %v221 = vunpack.c.l.b16 %v44
    %v222 = vunpack.c.h.b16 %v44
    %v223 = vunpack.c.l.b16 %v45
    %v224 = vunpack.c.h.b16 %v45
    %v225 = vunpack.c.l.b16 %v46
    %v226 = vunpack.c.h.b16 %v46
    %v227 = vunpack.c.l.b16 %v47
    %v228 = vunpack.c.h.b16 %v47
    %v229 = vunpack.c.l.b16 %v48
    %v230 = vunpack.c.h.b16 %v48
    %v231 = vunpack.c.l.b16 %v49
    %v232 = vunpack.c.h.b16 %v49
    %v233 = vunpack.c.l.b16 %v50
    %v234 = vunpack.c.h.b16 %v50
    %v235 = vunpack.c.l.b16 %v51
    %v236 = vunpack.c.h.b16 %v51
    %v237 = vunpack.c.l.b16 %v52
    %v238 = vunpack.c.h.b16 %v52
    %v239 = vunpack.c.l.b16 %v53
    %v240 = vunpack.c.h.b16 %v53
    %v241 = vunpack.c.l.b16 %v54
    %v242 = vunpack.c.h.b16 %v54
    %v243 = vunpack.c.l.b16 %v55
    %v244 = vunpack.c.h.b16 %v55
    %v245 = vunpack.c.l.b16 %v56
    %v246 = vunpack.c.h.b16 %v56
    %v247 = vunpack.c.l.b16 %v57
    %v248 = vunpack.c.h.b16 %v57
    %v249 = vunpack.c.l.b16 %v58
    %v250 = vunpack.c.h.b16 %v58
    %v251 = vunpack.c.l.b16 %v59
    %v252 = vunpack.c.h.b16 %v59
    %v253 = vunpack.c.l.b16 %v60
    %v254 = vunpack.c.h.b16 %v60
    %v255 = vunpack.c.l.b16 %v61
    %v256 = vunpack.c.h.b16 %v61
    %v257 = vunpack.c.l.b16 %v62
    %v258 = vunpack.c.h.b16 %v62
    %v259 = vunpack.c.l.b16 %v63
    %v260 = vunpack.c.h.b16 %v63
    %v261 = vunpack.c.l.b16 %v64
    %v262 = vunpack.c.h.b16 %v64
    %v263 = vunpack.c.l.b16 %v65
    %v264 = vunpack.c.h.b16 %v65
    %v265 = vunpack.c.l.b16 %v66
    %v266 = vunpack.c.h.b16 %v66
    %v267 = vunpack.c.l.b16 %v67
    %v268 = vunpack.c.h.b16 %v67
    %v269 = vunpack.c.l.b16 %v68
    %v270 = vunpack.c.h.b16 %v68
    %v271 = vunpack.c.l.b16 %v69
    %v272 = vunpack.c.h.b16 %v69
    %v273 = vunpack.c.l.b16 %v70
    %v274 = vunpack.c.h.b16 %v70
    %v275 = vunpack.c.l.b16 %v71
    %v276 = vunpack.c.h.b16 %v71
    %v277 = vunpack.c.l.b16 %v72
    %v278 = vunpack.c.h.b16 %v72
    %v279 = vunpack.c.l.b16 %v73
    %v280 = vunpack.c.h.b16 %v73
    %v281 = vunpack.c.l.b16 %v74
    %v282 = vunpack.c.h.b16 %v74
    %v283 = vunpack.c.l.b16 %v75
    %v284 = vunpack.c.h.b16 %v75
    %v285 = vunpack.c.l.b16 %v76
    %v286 = vunpack.c.h.b16 %v76
    %v287 = vunpack.c.l.b16 %v77
    %v288 = vunpack.c.h.b16 %v77
    %v289 = vunpack.c.l.b16 %v78
    %v290 = vunpack.c.h.b16 %v78
    %v291 = vunpack.c.l.b16 %v79
    %v292 = vunpack.c.h.b16 %v79
    %v293 = vunpack.c.l.b16 %v80
    %v294 = vunpack.c.h.b16 %v80
    %v295 = vunpack.c.l.b16 %v81
    %v296 = vunpack.c.h.b16 %v81
    %v297 = vunpack.c.l.b16 %v82
    %v298 = vunpack.c.h.b16 %v82
    %v299 = vunpack.c.l.b16 %v83
    %v300 = vunpack.c.h.b16 %v83
    %v301 = vunpack.c.l.b16 %v84
    %v302 = vunpack.c.h.b16 %v84
    %v303 = vunpack.c.l.b16 %v85
    %v304 = vunpack.c.h.b16 %v85
    %v305 = vunpack.c.l.b16 %v86
    %v306 = vunpack.c.h.b16 %v86
    %v307 = vunpack.c.l.b16 %v87
    %v308 = vunpack.c.h.b16 %v87
    %v309 = vunpack.c.l.b16 %v88
    %v310 = vunpack.c.h.b16 %v88
    %v311 = vunpack.c.l.b16 %v89
    %v312 = vunpack.c.h.b16 %v89
    %v313 = vunpack.c.l.b16 %v90
    %v314 = vunpack.c.h.b16 %v90
    %v315 = vunpack.c.l.b16 %v91
    %v316 = vunpack.c.h.b16 %v91
    %v317 = vunpack.c.l.b16 %v92
    %v318 = vunpack.c.h.b16 %v92
    %v319 = vunpack.c.l.b16 %v93
    %v320 = vunpack.c.h.b16 %v93
    %v321 = vunpack.c.l.b16 %v94
    %v322 = vunpack.c.h.b16 %v94
    %v323 = vunpack.c.l.b16 %v95
    %v324 = vunpack.c.h.b16 %v95
    %v325 = vunpack.c.l.b16 %v96
    %v326 = vunpack.c.h.b16 %v96
    %v327 = vunpack.c.l.b16 %v97
    %v328 = vunpack.c.h.b16 %v97
    %v329 = vpack.c.b16 %v189, %v185
    %v330 = vpack.c.b16 %v190, %v186
    %v331 = vpack.c.b16 %v191, %v187
    %v332 = vpack.c.b16 %v192, %v188
    %v333 = vpack.c.b16 %v197, %v193
    %v334 = vpack.c.b16 %v198, %v194
    %v335 = vpack.c.b16 %v199, %v195
    %v336 = vpack.c.b16 %v200, %v196
    %v337 = vpack.c.b16 %v205, %v201
    %v338 = vpack.c.b16 %v206, %v202
    %v339 = vpack.c.b16 %v207, %v203
    %v340 = vpack.c.b16 %v208, %v204
    %v341 = vpack.c.b16 %v213, %v209
    %v342 = vpack.c.b16 %v214, %v210
    %v343 = vpack.c.b16 %v215, %v211
    %v344 = vpack.c.b16 %v216, %v212
    %v345 = vpack.c.b16 %v221, %v217
    %v346 = vpack.c.b16 %v222, %v218
    %v347 = vpack.c.b16 %v223, %v219
    %v348 = vpack.c.b16 %v224, %v220
    %v349 = vpack.c.b16 %v229, %v225
    %v350 = vpack.c.b16 %v230, %v226
    %v351 = vpack.c.b16 %v231, %v227
    %v352 = vpack.c.b16 %v232, %v228
    %v353 = vpack.c.b16 %v237, %v233
    %v354 = vpack.c.b16 %v238, %v234
    %v355 = vpack.c.b16 %v239, %v235
    %v356 = vpack.c.b16 %v240, %v236
    %v357 = vpack.c.b16 %v245, %v241
    %v358 = vpack.c.b16 %v246, %v242
    %v359 = vpack.c.b16 %v247, %v243
    %v360 = vpack.c.b16 %v248, %v244
    %v361 = vpack.c.b16 %v253, %v249
    %v362 = vpack.c.b16 %v254, %v250
    %v363 = vpack.c.b16 %v255, %v251
    %v364 = vpack.c.b16 %v256, %v252
    %v365 = vpack.c.b16 %v261, %v257
    %v366 = vpack.c.b16 %v262, %v258
    %v367 = vpack.c.b16 %v263, %v259
    %v368 = vpack.c.b16 %v264, %v260
    %v369 = vpack.c.b16 %v269, %v265
    %v370 = vpack.c.b16 %v270, %v266
    %v371 = vpack.c.b16 %v271, %v267
    %v372 = vpack.c.b16 %v272, %v268
    %v373 = vpack.c.b16 %v277, %v273
    %v374 = vpack.c.b16 %v278, %v274
    %v375 = vpack.c.b16 %v279, %v275
    %v376 = vpack.c.b16 %v280, %v276
    %v377 = vpack.c.b16 %v285, %v281
    %v378 = vpack.c.b16 %v286, %v282
    %v379 = vpack.c.b16 %v287, %v283
    %v380 = vpack.c.b16 %v288, %v284
    %v381 = vpack.c.b16 %v293, %v289
    %v382 = vpack.c.b16 %v294, %v290
    %v383 = vpack.c.b16 %v295, %v291
    %v384 = vpack.c.b16 %v296, %v292
    %v385 = vpack.c.b16 %v301, %v297
    %v386 = vpack.c.b16 %v302, %v298
    %v387 = vpack.c.b16 %v303, %v299
    %v388 = vpack.c.b16 %v304, %v300
    %v389 = vpack.c.b16 %v309, %v305
    %v390 = vpack.c.b16 %v310, %v306
    %v391 = vpack.c.b16 %v311, %v307
    %v392 = vpack.c.b16 %v312, %v308
    %v393 = vpack.c.b16 %v317, %v313
    %v394 = vpack.c.b16 %v318, %v314
    %v395 = vpack.c.b16 %v319, %v315
    %v396 = vpack.c.b16 %v320, %v316
    %v397 = vpack.c.b16 %v325, %v321
    %v398 = vpack.c.b16 %v326, %v322
    %v399 = vpack.c.b16 %v327, %v323
    %v400 = vpack.c.b16 %v328, %v324
    %vm473 = vcmask 261120
    %v475 = vsel %vm473, %v110, 0
    %477 = vmatpush.bf16.msra.mxu0 %v357
    %478 = vmatpush.bf16.msra.mxu0 %v353
    %479 = vmatpush.bf16.msra.mxu0 %v349
    %480 = vmatpush.bf16.msra.mxu0 %v345
    %481 = vmatpush.bf16.msra.mxu0 %v341
    %482 = vmatpush.bf16.msra.mxu0 %v337
    %483 = vmatpush.bf16.msra.mxu0 %v333
    %484 = vmatpush.bf16.msra.mxu0 %v329
    %485 = vmatmul.bf16.gmra.mxu0 %v108
    %v486 = vpop.f32.mrf.mxu0
    %v487 = vadd.f32 0.0, %v486
    %v488 = vpop.f32.mrf.mxu0
    %v489 = vadd.f32 0.0, %v488
    %490 = vdwg.mxu0
    %491 = vmatpush.bf16.msra.mxu0 %v389
    %492 = vmatpush.bf16.msra.mxu0 %v385
    %493 = vmatpush.bf16.msra.mxu0 %v381
    %494 = vmatpush.bf16.msra.mxu0 %v377
    %495 = vmatpush.bf16.msra.mxu0 %v373
    %496 = vmatpush.bf16.msra.mxu0 %v369
    %497 = vmatpush.bf16.msra.mxu0 %v365
    %498 = vmatpush.bf16.msra.mxu0 %v361
    %499 = vmatmul.bf16.gmra.mxu0 %v109
    %v500 = vpop.f32.mrf.mxu0
    %v501 = vadd.f32 %v487, %v500
    %v502 = vpop.f32.mrf.mxu0
    %v503 = vadd.f32 %v489, %v502
    %504 = vdwg.mxu0
    %505 = vmatpush.bf16.msra.mxu0 0
    %506 = vmatpush.bf16.msra.mxu0 0
    %507 = vmatpush.bf16.msra.mxu0 0
    %508 = vmatpush.bf16.msra.mxu0 0
    %509 = vmatpush.bf16.msra.mxu0 0
    %510 = vmatpush.bf16.msra.mxu0 0
    %511 = vmatpush.bf16.msra.mxu0 %v397
    %512 = vmatpush.bf16.msra.mxu0 %v393
    %513 = vmatmul.bf16.gmra.mxu0 %v475
    %v514 = vpop.f32.mrf.mxu0
    %v515 = vadd.f32 %v501, %v514
    %v516 = vpop.f32.mrf.mxu0
    %v517 = vadd.f32 %v503, %v516
    %518 = vdwg.mxu0
    %519 = vmatpush.bf16.msra.mxu0 %v358
    %520 = vmatpush.bf16.msra.mxu0 %v354
    %521 = vmatpush.bf16.msra.mxu0 %v350
    %522 = vmatpush.bf16.msra.mxu0 %v346
    %523 = vmatpush.bf16.msra.mxu0 %v342
    %524 = vmatpush.bf16.msra.mxu0 %v338
    %525 = vmatpush.bf16.msra.mxu0 %v334
    %526 = vmatpush.bf16.msra.mxu0 %v330
    %527 = vmatmul.bf16.gmra.mxu0 %v108
    %v528 = vpop.f32.mrf.mxu0
    %v529 = vadd.f32 0.0, %v528
    %v530 = vpop.f32.mrf.mxu0
    %v531 = vadd.f32 0.0, %v530
    %532 = vdwg.mxu0
    %533 = vmatpush.bf16.msra.mxu0 %v390
    %534 = vmatpush.bf16.msra.mxu0 %v386
    %535 = vmatpush.bf16.msra.mxu0 %v382
    %536 = vmatpush.bf16.msra.mxu0 %v378
    %537 = vmatpush.bf16.msra.mxu0 %v374
    %538 = vmatpush.bf16.msra.mxu0 %v370
    %539 = vmatpush.bf16.msra.mxu0 %v366
    %540 = vmatpush.bf16.msra.mxu0 %v362
    %541 = vmatmul.bf16.gmra.mxu0 %v109
    %v542 = vpop.f32.mrf.mxu0
    %v543 = vadd.f32 %v529, %v542
    %v544 = vpop.f32.mrf.mxu0
    %v545 = vadd.f32 %v531, %v544
    %546 = vdwg.mxu0
    %547 = vmatpush.bf16.msra.mxu0 0
    %548 = vmatpush.bf16.msra.mxu0 0
    %549 = vmatpush.bf16.msra.mxu0 0
    %550 = vmatpush.bf16.msra.mxu0 0
    %551 = vmatpush.bf16.msra.mxu0 0
    %552 = vmatpush.bf16.msra.mxu0 0
    %553 = vmatpush.bf16.msra.mxu0 %v398
    %554 = vmatpush.bf16.msra.mxu0 %v394
    %555 = vmatmul.bf16.gmra.mxu0 %v475
    %v556 = vpop.f32.mrf.mxu0
    %v557 = vadd.f32 %v543, %v556
    %v558 = vpop.f32.mrf.mxu0
    %v559 = vadd.f32 %v545, %v558
    %560 = vdwg.mxu0
    %561 = vmatpush.bf16.msra.mxu0 %v359
    %562 = vmatpush.bf16.msra.mxu0 %v355
    %563 = vmatpush.bf16.msra.mxu0 %v351
    %564 = vmatpush.bf16.msra.mxu0 %v347
    %565 = vmatpush.bf16.msra.mxu0 %v343
    %566 = vmatpush.bf16.msra.mxu0 %v339
    %567 = vmatpush.bf16.msra.mxu0 %v335
    %568 = vmatpush.bf16.msra.mxu0 %v331
    %569 = vmatmul.bf16.gmra.mxu0 %v108
    %v570 = vpop.f32.mrf.mxu0
    %v571 = vadd.f32 0.0, %v570
    %v572 = vpop.f32.mrf.mxu0
    %v573 = vadd.f32 0.0, %v572
    %574 = vdwg.mxu0
    %575 = vmatpush.bf16.msra.mxu0 %v391
    %576 = vmatpush.bf16.msra.mxu0 %v387
    %577 = vmatpush.bf16.msra.mxu0 %v383
    %578 = vmatpush.bf16.msra.mxu0 %v379
    %579 = vmatpush.bf16.msra.mxu0 %v375
    %580 = vmatpush.bf16.msra.mxu0 %v371
    %581 = vmatpush.bf16.msra.mxu0 %v367
    %582 = vmatpush.bf16.msra.mxu0 %v363
    %583 = vmatmul.bf16.gmra.mxu0 %v109
    %v584 = vpop.f32.mrf.mxu0
    %v585 = vadd.f32 %v571, %v584
    %v586 = vpop.f32.mrf.mxu0
    %v587 = vadd.f32 %v573, %v586
    %588 = vdwg.mxu0
    %589 = vmatpush.bf16.msra.mxu0 0
    %590 = vmatpush.bf16.msra.mxu0 0
    %591 = vmatpush.bf16.msra.mxu0 0
    %592 = vmatpush.bf16.msra.mxu0 0
    %593 = vmatpush.bf16.msra.mxu0 0
    %594 = vmatpush.bf16.msra.mxu0 0
    %595 = vmatpush.bf16.msra.mxu0 %v399
    %596 = vmatpush.bf16.msra.mxu0 %v395
    %597 = vmatmul.bf16.gmra.mxu0 %v475
    %v598 = vpop.f32.mrf.mxu0
    %v599 = vadd.f32 %v585, %v598
    %v600 = vpop.f32.mrf.mxu0
    %v601 = vadd.f32 %v587, %v600
    %602 = vdwg.mxu0
    %603 = vmatpush.bf16.msra.mxu0 %v360
    %604 = vmatpush.bf16.msra.mxu0 %v356
    %605 = vmatpush.bf16.msra.mxu0 %v352
    %606 = vmatpush.bf16.msra.mxu0 %v348
    %607 = vmatpush.bf16.msra.mxu0 %v344
    %608 = vmatpush.bf16.msra.mxu0 %v340
    %609 = vmatpush.bf16.msra.mxu0 %v336
    %610 = vmatpush.bf16.msra.mxu0 %v332
    %611 = vmatmul.bf16.gmra.mxu0 %v108
    %v612 = vpop.f32.mrf.mxu0
    %v613 = vadd.f32 0.0, %v612
    %v614 = vpop.f32.mrf.mxu0
    %v615 = vadd.f32 0.0, %v614
    %616 = vdwg.mxu0
    %617 = vmatpush.bf16.msra.mxu0 %v392
    %618 = vmatpush.bf16.msra.mxu0 %v388
    %619 = vmatpush.bf16.msra.mxu0 %v384
    %620 = vmatpush.bf16.msra.mxu0 %v380
    %621 = vmatpush.bf16.msra.mxu0 %v376
    %622 = vmatpush.bf16.msra.mxu0 %v372
    %623 = vmatpush.bf16.msra.mxu0 %v368
    %624 = vmatpush.bf16.msra.mxu0 %v364
    %625 = vmatmul.bf16.gmra.mxu0 %v109
    %v626 = vpop.f32.mrf.mxu0
    %v627 = vadd.f32 %v613, %v626
    %v628 = vpop.f32.mrf.mxu0
    %v629 = vadd.f32 %v615, %v628
    %630 = vdwg.mxu0
    %631 = vmatpush.bf16.msra.mxu0 0
    %632 = vmatpush.bf16.msra.mxu0 0
    %633 = vmatpush.bf16.msra.mxu0 0
    %634 = vmatpush.bf16.msra.mxu0 0
    %635 = vmatpush.bf16.msra.mxu0 0
    %636 = vmatpush.bf16.msra.mxu0 0
    %637 = vmatpush.bf16.msra.mxu0 %v400
    %638 = vmatpush.bf16.msra.mxu0 %v396
    %639 = vmatmul.bf16.gmra.mxu0 %v475
    %v640 = vpop.f32.mrf.mxu0
    %v641 = vadd.f32 %v627, %v640
    %v642 = vpop.f32.mrf.mxu0
    %v643 = vadd.f32 %v629, %v642
    %644 = vdwg.mxu0
    %v645 = vmax.f32 %v515, %v557
    %v646 = vmax.f32 %v517, %v559
    %v647 = vmax.f32 %v599, %v641
    %v648 = vmax.f32 %v601, %v643
    %v649 = vmax.f32 %v645, %v647
    %v650 = vmax.f32 %v646, %v648
    %v651 = vld [vmem:[%s2] sm:$0x1]
    %v653 = vperm.slane %v651, 0
    %v655 = vadd.f32 %v649, %v653
    %v656 = vadd.f32 %v650, %v653
    %v657 = vmax.f32 %v655, 0.0
    %v658 = vmax.f32 %v656, 0.0
    %v659 = vpack.c.bf16 %v657, %v657
    %v660 = vpack.c.bf16 %v658, %v658
    %v661 = vld [vmem:[%s4] sm:$0x1]
    %v663 = vperm.slane %v661, 0
    %v665 = vld [vmem:[%s3] sm:$0xf]
    %v666 = vld [vmem:[%s3 + $0x4] sm:$0xf]
    %v667 = vld [vmem:[%s3 + $0x8] sm:$0xf]
    %v668 = vld [vmem:[%s3 + $0xc] sm:$0xf]
    %v669 = vld [vmem:[%s3 + $0x10] sm:$0xf]
    %v670 = vld [vmem:[%s3 + $0x14] sm:$0xf]
    %v671 = vld [vmem:[%s3 + $0x18] sm:$0xf]
    %v672 = vld [vmem:[%s3 + $0x1c] sm:$0xf]
    %v673 = vld [vmem:[%s3 + $0x20] sm:$0xf]
    %v674 = vld [vmem:[%s3 + $0x24] sm:$0xf]
    %v675 = vld [vmem:[%s3 + $0x28] sm:$0xf]
    %v676 = vld [vmem:[%s3 + $0x2c] sm:$0xf]
    %v677 = vld [vmem:[%s3 + $0x30] sm:$0xf]
    %v678 = vld [vmem:[%s3 + $0x34] sm:$0xf]
    %v679 = vld [vmem:[%s3 + $0x38] sm:$0xf]
    %v680 = vld [vmem:[%s3 + $0x3c] sm:$0xf]
    %v697 = vunpack.c.l.b16 %v665
    %v698 = vunpack.c.l.b16 %v666
    %v699 = vunpack.c.l.b16 %v667
    %v700 = vunpack.c.l.b16 %v668
    %v701 = vunpack.c.l.b16 %v669
    %v702 = vunpack.c.l.b16 %v670
    %v703 = vunpack.c.l.b16 %v671
    %v704 = vunpack.c.l.b16 %v672
    %v705 = vunpack.c.l.b16 %v673
    %v706 = vunpack.c.l.b16 %v674
    %v707 = vunpack.c.l.b16 %v675
    %v708 = vunpack.c.l.b16 %v676
    %v709 = vunpack.c.l.b16 %v677
    %v710 = vunpack.c.l.b16 %v678
    %v711 = vunpack.c.l.b16 %v679
    %v712 = vunpack.c.l.b16 %v680
    %v713 = vpack.c.b16 %v698, %v697
    %v714 = vpack.c.b16 %v700, %v699
    %v715 = vpack.c.b16 %v702, %v701
    %v716 = vpack.c.b16 %v704, %v703
    %v717 = vpack.c.b16 %v706, %v705
    %v718 = vpack.c.b16 %v708, %v707
    %v719 = vpack.c.b16 %v710, %v709
    %v720 = vpack.c.b16 %v712, %v711
    %729 = vmatpush.bf16.msra.mxu0 %v720
    %730 = vmatpush.bf16.msra.mxu0 %v719
    %731 = vmatpush.bf16.msra.mxu0 %v718
    %732 = vmatpush.bf16.msra.mxu0 %v717
    %733 = vmatpush.bf16.msra.mxu0 %v716
    %734 = vmatpush.bf16.msra.mxu0 %v715
    %735 = vmatpush.bf16.msra.mxu0 %v714
    %736 = vmatpush.bf16.msra.mxu0 %v713
    %737 = vmatmul.bf16.gmra.mxu0 %v659
    %v738 = vpop.f32.mrf.mxu0
    %v739 = vadd.f32 0.0, %v738
    %v740 = vpop.f32.mrf.mxu0
    %741 = vdwg.mxu0
    %v742 = vadd.f32 %v663, %v739
    %v743 = vld [vmem:[%s3 + $0x40] sm:$0xf]
    %v744 = vld [vmem:[%s3 + $0x44] sm:$0xf]
    %v745 = vld [vmem:[%s3 + $0x48] sm:$0xf]
    %v746 = vld [vmem:[%s3 + $0x4c] sm:$0xf]
    %v747 = vld [vmem:[%s3 + $0x50] sm:$0xf]
    %v748 = vld [vmem:[%s3 + $0x54] sm:$0xf]
    %v749 = vld [vmem:[%s3 + $0x58] sm:$0xf]
    %v750 = vld [vmem:[%s3 + $0x5c] sm:$0xf]
    %v751 = vld [vmem:[%s3 + $0x60] sm:$0xf]
    %v752 = vld [vmem:[%s3 + $0x64] sm:$0xf]
    %v753 = vld [vmem:[%s3 + $0x68] sm:$0xf]
    %v754 = vld [vmem:[%s3 + $0x6c] sm:$0xf]
    %v755 = vld [vmem:[%s3 + $0x70] sm:$0xf]
    %v756 = vld [vmem:[%s3 + $0x74] sm:$0xf]
    %v757 = vld [vmem:[%s3 + $0x78] sm:$0xf]
    %v758 = vld [vmem:[%s3 + $0x7c] sm:$0xf]
    %v760 = vunpack.c.l.b16 %v659
    %v761 = vpack.c.b16 %v760, %v760
    %v762 = vrot.slane %v761, 1
    %v780 = vunpack.c.l.b16 %v743
    %v781 = vunpack.c.l.b16 %v744
    %v782 = vunpack.c.l.b16 %v745
    %v783 = vunpack.c.l.b16 %v746
    %v784 = vunpack.c.l.b16 %v747
    %v785 = vunpack.c.l.b16 %v748
    %v786 = vunpack.c.l.b16 %v749
    %v787 = vunpack.c.l.b16 %v750
    %v788 = vunpack.c.l.b16 %v751
    %v789 = vunpack.c.l.b16 %v752
    %v790 = vunpack.c.l.b16 %v753
    %v791 = vunpack.c.l.b16 %v754
    %v792 = vunpack.c.l.b16 %v755
    %v793 = vunpack.c.l.b16 %v756
    %v794 = vunpack.c.l.b16 %v757
    %v795 = vunpack.c.l.b16 %v758
    %v796 = vpack.c.b16 %v781, %v780
    %v797 = vpack.c.b16 %v783, %v782
    %v798 = vpack.c.b16 %v785, %v784
    %v799 = vpack.c.b16 %v787, %v786
    %v800 = vpack.c.b16 %v789, %v788
    %v801 = vpack.c.b16 %v791, %v790
    %v802 = vpack.c.b16 %v793, %v792
    %v803 = vpack.c.b16 %v795, %v794
    %812 = vmatpush.bf16.msra.mxu0 %v803
    %813 = vmatpush.bf16.msra.mxu0 %v802
    %814 = vmatpush.bf16.msra.mxu0 %v801
    %815 = vmatpush.bf16.msra.mxu0 %v800
    %816 = vmatpush.bf16.msra.mxu0 %v799
    %817 = vmatpush.bf16.msra.mxu0 %v798
    %818 = vmatpush.bf16.msra.mxu0 %v797
    %819 = vmatpush.bf16.msra.mxu0 %v796
    %820 = vmatmul.bf16.gmra.mxu0 %v762
    %v821 = vpop.f32.mrf.mxu0
    %v822 = vadd.f32 0.0, %v821
    %v823 = vpop.f32.mrf.mxu0
    %824 = vdwg.mxu0
    %v825 = vadd.f32 %v742, %v822
    %v826 = vld [vmem:[%s3 + $0x80] sm:$0xf]
    %v827 = vld [vmem:[%s3 + $0x84] sm:$0xf]
    %v828 = vld [vmem:[%s3 + $0x88] sm:$0xf]
    %v829 = vld [vmem:[%s3 + $0x8c] sm:$0xf]
    %v830 = vld [vmem:[%s3 + $0x90] sm:$0xf]
    %v831 = vld [vmem:[%s3 + $0x94] sm:$0xf]
    %v832 = vld [vmem:[%s3 + $0x98] sm:$0xf]
    %v833 = vld [vmem:[%s3 + $0x9c] sm:$0xf]
    %v834 = vld [vmem:[%s3 + $0xa0] sm:$0xf]
    %v835 = vld [vmem:[%s3 + $0xa4] sm:$0xf]
    %v836 = vld [vmem:[%s3 + $0xa8] sm:$0xf]
    %v837 = vld [vmem:[%s3 + $0xac] sm:$0xf]
    %v838 = vld [vmem:[%s3 + $0xb0] sm:$0xf]
    %v839 = vld [vmem:[%s3 + $0xb4] sm:$0xf]
    %v840 = vld [vmem:[%s3 + $0xb8] sm:$0xf]
    %v841 = vld [vmem:[%s3 + $0xbc] sm:$0xf]
    %v842 = vrot.slane %v761, 2
    %v860 = vunpack.c.l.b16 %v826
    %v861 = vunpack.c.l.b16 %v827
    %v862 = vunpack.c.l.b16 %v828
    %v863 = vunpack.c.l.b16 %v829
    %v864 = vunpack.c.l.b16 %v830
    %v865 = vunpack.c.l.b16 %v831
    %v866 = vunpack.c.l.b16 %v832
    %v867 = vunpack.c.l.b16 %v833
    %v868 = vunpack.c.l.b16 %v834
    %v869 = vunpack.c.l.b16 %v835
    %v870 = vunpack.c.l.b16 %v836
    %v871 = vunpack.c.l.b16 %v837
    %v872 = vunpack.c.l.b16 %v838
    %v873 = vunpack.c.l.b16 %v839
    %v874 = vunpack.c.l.b16 %v840
    %v875 = vunpack.c.l.b16 %v841
    %v876 = vpack.c.b16 %v861, %v860
    %v877 = vpack.c.b16 %v863, %v862
    %v878 = vpack.c.b16 %v865, %v864
    %v879 = vpack.c.b16 %v867, %v866
    %v880 = vpack.c.b16 %v869, %v868
    %v881 = vpack.c.b16 %v871, %v870
    %v882 = vpack.c.b16 %v873, %v872
    %v883 = vpack.c.b16 %v875, %v874
    %892 = vmatpush.bf16.msra.mxu0 %v883
    %893 = vmatpush.bf16.msra.mxu0 %v882
    %894 = vmatpush.bf16.msra.mxu0 %v881
    %895 = vmatpush.bf16.msra.mxu0 %v880
    %896 = vmatpush.bf16.msra.mxu0 %v879
    %897 = vmatpush.bf16.msra.mxu0 %v878
    %898 = vmatpush.bf16.msra.mxu0 %v877
    %899 = vmatpush.bf16.msra.mxu0 %v876
    %900 = vmatmul.bf16.gmra.mxu0 %v842
    %v901 = vpop.f32.mrf.mxu0
    %v902 = vadd.f32 0.0, %v901
    %v903 = vpop.f32.mrf.mxu0
    %904 = vdwg.mxu0
    %v905 = vadd.f32 %v825, %v902
    %v906 = vld [vmem:[%s3 + $0xc0] sm:$0xf]
    %v907 = vld [vmem:[%s3 + $0xc4] sm:$0xf]
    %v908 = vld [vmem:[%s3 + $0xc8] sm:$0xf]
    %v909 = vld [vmem:[%s3 + $0xcc] sm:$0xf]
    %v910 = vld [vmem:[%s3 + $0xd0] sm:$0xf]
    %v911 = vld [vmem:[%s3 + $0xd4] sm:$0xf]
    %v912 = vld [vmem:[%s3 + $0xd8] sm:$0xf]
    %v913 = vld [vmem:[%s3 + $0xdc] sm:$0xf]
    %v914 = vld [vmem:[%s3 + $0xe0] sm:$0xf]
    %v915 = vld [vmem:[%s3 + $0xe4] sm:$0xf]
    %v916 = vld [vmem:[%s3 + $0xe8] sm:$0xf]
    %v917 = vld [vmem:[%s3 + $0xec] sm:$0xf]
    %v918 = vld [vmem:[%s3 + $0xf0] sm:$0xf]
    %v919 = vld [vmem:[%s3 + $0xf4] sm:$0xf]
    %v920 = vld [vmem:[%s3 + $0xf8] sm:$0xf]
    %v921 = vld [vmem:[%s3 + $0xfc] sm:$0xf]
    %v922 = vrot.slane %v761, 3
    %v940 = vunpack.c.l.b16 %v906
    %v941 = vunpack.c.l.b16 %v907
    %v942 = vunpack.c.l.b16 %v908
    %v943 = vunpack.c.l.b16 %v909
    %v944 = vunpack.c.l.b16 %v910
    %v945 = vunpack.c.l.b16 %v911
    %v946 = vunpack.c.l.b16 %v912
    %v947 = vunpack.c.l.b16 %v913
    %v948 = vunpack.c.l.b16 %v914
    %v949 = vunpack.c.l.b16 %v915
    %v950 = vunpack.c.l.b16 %v916
    %v951 = vunpack.c.l.b16 %v917
    %v952 = vunpack.c.l.b16 %v918
    %v953 = vunpack.c.l.b16 %v919
    %v954 = vunpack.c.l.b16 %v920
    %v955 = vunpack.c.l.b16 %v921
    %v956 = vpack.c.b16 %v941, %v940
    %v957 = vpack.c.b16 %v943, %v942
    %v958 = vpack.c.b16 %v945, %v944
    %v959 = vpack.c.b16 %v947, %v946
    %v960 = vpack.c.b16 %v949, %v948
    %v961 = vpack.c.b16 %v951, %v950
    %v962 = vpack.c.b16 %v953, %v952
    %v963 = vpack.c.b16 %v955, %v954
    %972 = vmatpush.bf16.msra.mxu0 %v963
    %973 = vmatpush.bf16.msra.mxu0 %v962
    %974 = vmatpush.bf16.msra.mxu0 %v961
    %975 = vmatpush.bf16.msra.mxu0 %v960
    %976 = vmatpush.bf16.msra.mxu0 %v959
    %977 = vmatpush.bf16.msra.mxu0 %v958
    %978 = vmatpush.bf16.msra.mxu0 %v957
    %979 = vmatpush.bf16.msra.mxu0 %v956
    %980 = vmatmul.bf16.gmra.mxu0 %v922
    %v981 = vpop.f32.mrf.mxu0
    %v982 = vadd.f32 0.0, %v981
    %v983 = vpop.f32.mrf.mxu0
    %984 = vdwg.mxu0
    %v985 = vadd.f32 %v905, %v982
    %v986 = vld [vmem:[%s3 + $0x100] sm:$0xf]
    %v987 = vld [vmem:[%s3 + $0x104] sm:$0xf]
    %v988 = vld [vmem:[%s3 + $0x108] sm:$0xf]
    %v989 = vld [vmem:[%s3 + $0x10c] sm:$0xf]
    %v990 = vld [vmem:[%s3 + $0x110] sm:$0xf]
    %v991 = vld [vmem:[%s3 + $0x114] sm:$0xf]
    %v992 = vld [vmem:[%s3 + $0x118] sm:$0xf]
    %v993 = vld [vmem:[%s3 + $0x11c] sm:$0xf]
    %v994 = vld [vmem:[%s3 + $0x120] sm:$0xf]
    %v995 = vld [vmem:[%s3 + $0x124] sm:$0xf]
    %v996 = vld [vmem:[%s3 + $0x128] sm:$0xf]
    %v997 = vld [vmem:[%s3 + $0x12c] sm:$0xf]
    %v998 = vld [vmem:[%s3 + $0x130] sm:$0xf]
    %v999 = vld [vmem:[%s3 + $0x134] sm:$0xf]
    %v1000 = vld [vmem:[%s3 + $0x138] sm:$0xf]
    %v1001 = vld [vmem:[%s3 + $0x13c] sm:$0xf]
    %v1018 = vunpack.c.l.b16 %v986
    %v1019 = vunpack.c.l.b16 %v987
    %v1020 = vunpack.c.l.b16 %v988
    %v1021 = vunpack.c.l.b16 %v989
    %v1022 = vunpack.c.l.b16 %v990
    %v1023 = vunpack.c.l.b16 %v991
    %v1024 = vunpack.c.l.b16 %v992
    %v1025 = vunpack.c.l.b16 %v993
    %v1026 = vunpack.c.l.b16 %v994
    %v1027 = vunpack.c.l.b16 %v995
    %v1028 = vunpack.c.l.b16 %v996
    %v1029 = vunpack.c.l.b16 %v997
    %v1030 = vunpack.c.l.b16 %v998
    %v1031 = vunpack.c.l.b16 %v999
    %v1032 = vunpack.c.l.b16 %v1000
    %v1033 = vunpack.c.l.b16 %v1001
    %v1034 = vpack.c.b16 %v1019, %v1018
    %v1035 = vpack.c.b16 %v1021, %v1020
    %v1036 = vpack.c.b16 %v1023, %v1022
    %v1037 = vpack.c.b16 %v1025, %v1024
    %v1038 = vpack.c.b16 %v1027, %v1026
    %v1039 = vpack.c.b16 %v1029, %v1028
    %v1040 = vpack.c.b16 %v1031, %v1030
    %v1041 = vpack.c.b16 %v1033, %v1032
    %1050 = vmatpush.bf16.msra.mxu0 %v1041
    %1051 = vmatpush.bf16.msra.mxu0 %v1040
    %1052 = vmatpush.bf16.msra.mxu0 %v1039
    %1053 = vmatpush.bf16.msra.mxu0 %v1038
    %1054 = vmatpush.bf16.msra.mxu0 %v1037
    %1055 = vmatpush.bf16.msra.mxu0 %v1036
    %1056 = vmatpush.bf16.msra.mxu0 %v1035
    %1057 = vmatpush.bf16.msra.mxu0 %v1034
    %1058 = vmatmul.bf16.gmra.mxu0 %v660
    %v1059 = vpop.f32.mrf.mxu0
    %v1060 = vadd.f32 0.0, %v1059
    %v1061 = vpop.f32.mrf.mxu0
    %1062 = vdwg.mxu0
    %v1063 = vadd.f32 %v985, %v1060
    %v1064 = vld [vmem:[%s3 + $0x140] sm:$0xf]
    %v1065 = vld [vmem:[%s3 + $0x144] sm:$0xf]
    %v1066 = vld [vmem:[%s3 + $0x148] sm:$0xf]
    %v1067 = vld [vmem:[%s3 + $0x14c] sm:$0xf]
    %v1068 = vld [vmem:[%s3 + $0x150] sm:$0xf]
    %v1069 = vld [vmem:[%s3 + $0x154] sm:$0xf]
    %v1070 = vld [vmem:[%s3 + $0x158] sm:$0xf]
    %v1071 = vld [vmem:[%s3 + $0x15c] sm:$0xf]
    %v1072 = vld [vmem:[%s3 + $0x160] sm:$0xf]
    %v1073 = vld [vmem:[%s3 + $0x164] sm:$0xf]
    %v1074 = vld [vmem:[%s3 + $0x168] sm:$0xf]
    %v1075 = vld [vmem:[%s3 + $0x16c] sm:$0xf]
    %v1076 = vld [vmem:[%s3 + $0x170] sm:$0xf]
    %v1077 = vld [vmem:[%s3 + $0x174] sm:$0xf]
    %v1078 = vld [vmem:[%s3 + $0x178] sm:$0xf]
    %v1079 = vld [vmem:[%s3 + $0x17c] sm:$0xf]
    %v1081 = vunpack.c.l.b16 %v660
    %v1082 = vpack.c.b16 %v1081, %v1081
    %v1083 = vrot.slane %v1082, 1
    %v1101 = vunpack.c.l.b16 %v1064
    %v1102 = vunpack.c.l.b16 %v1065
    %v1103 = vunpack.c.l.b16 %v1066
    %v1104 = vunpack.c.l.b16 %v1067
    %v1105 = vunpack.c.l.b16 %v1068
    %v1106 = vunpack.c.l.b16 %v1069
    %v1107 = vunpack.c.l.b16 %v1070
    %v1108 = vunpack.c.l.b16 %v1071
    %v1109 = vunpack.c.l.b16 %v1072
    %v1110 = vunpack.c.l.b16 %v1073
    %v1111 = vunpack.c.l.b16 %v1074
    %v1112 = vunpack.c.l.b16 %v1075
    %v1113 = vunpack.c.l.b16 %v1076
    %v1114 = vunpack.c.l.b16 %v1077
    %v1115 = vunpack.c.l.b16 %v1078
    %v1116 = vunpack.c.l.b16 %v1079
    %v1117 = vpack.c.b16 %v1102, %v1101
    %v1118 = vpack.c.b16 %v1104, %v1103
    %v1119 = vpack.c.b16 %v1106, %v1105
    %v1120 = vpack.c.b16 %v1108, %v1107
    %v1121 = vpack.c.b16 %v1110, %v1109
    %v1122 = vpack.c.b16 %v1112, %v1111
    %v1123 = vpack.c.b16 %v1114, %v1113
    %v1124 = vpack.c.b16 %v1116, %v1115
    %1133 = vmatpush.bf16.msra.mxu0 %v1124
    %1134 = vmatpush.bf16.msra.mxu0 %v1123
    %1135 = vmatpush.bf16.msra.mxu0 %v1122
    %1136 = vmatpush.bf16.msra.mxu0 %v1121
    %1137 = vmatpush.bf16.msra.mxu0 %v1120
    %1138 = vmatpush.bf16.msra.mxu0 %v1119
    %1139 = vmatpush.bf16.msra.mxu0 %v1118
    %1140 = vmatpush.bf16.msra.mxu0 %v1117
    %1141 = vmatmul.bf16.gmra.mxu0 %v1083
    %v1142 = vpop.f32.mrf.mxu0
    %v1143 = vadd.f32 0.0, %v1142
    %v1144 = vpop.f32.mrf.mxu0
    %1145 = vdwg.mxu0
    %v1146 = vadd.f32 %v1063, %v1143
    %v1147 = vld [vmem:[%s3 + $0x180] sm:$0xf]
    %v1148 = vld [vmem:[%s3 + $0x184] sm:$0xf]
    %v1149 = vld [vmem:[%s3 + $0x188] sm:$0xf]
    %v1150 = vld [vmem:[%s3 + $0x18c] sm:$0xf]
    %v1151 = vld [vmem:[%s3 + $0x190] sm:$0xf]
    %v1152 = vld [vmem:[%s3 + $0x194] sm:$0xf]
    %v1153 = vld [vmem:[%s3 + $0x198] sm:$0xf]
    %v1154 = vld [vmem:[%s3 + $0x19c] sm:$0xf]
    %v1155 = vld [vmem:[%s3 + $0x1a0] sm:$0xf]
    %v1156 = vld [vmem:[%s3 + $0x1a4] sm:$0xf]
    %v1157 = vld [vmem:[%s3 + $0x1a8] sm:$0xf]
    %v1158 = vld [vmem:[%s3 + $0x1ac] sm:$0xf]
    %v1159 = vld [vmem:[%s3 + $0x1b0] sm:$0xf]
    %v1160 = vld [vmem:[%s3 + $0x1b4] sm:$0xf]
    %v1161 = vld [vmem:[%s3 + $0x1b8] sm:$0xf]
    %v1162 = vld [vmem:[%s3 + $0x1bc] sm:$0xf]
    %v1163 = vrot.slane %v1082, 2
    %v1181 = vunpack.c.l.b16 %v1147
    %v1182 = vunpack.c.l.b16 %v1148
    %v1183 = vunpack.c.l.b16 %v1149
    %v1184 = vunpack.c.l.b16 %v1150
    %v1185 = vunpack.c.l.b16 %v1151
    %v1186 = vunpack.c.l.b16 %v1152
    %v1187 = vunpack.c.l.b16 %v1153
    %v1188 = vunpack.c.l.b16 %v1154
    %v1189 = vunpack.c.l.b16 %v1155
    %v1190 = vunpack.c.l.b16 %v1156
    %v1191 = vunpack.c.l.b16 %v1157
    %v1192 = vunpack.c.l.b16 %v1158
    %v1193 = vunpack.c.l.b16 %v1159
    %v1194 = vunpack.c.l.b16 %v1160
    %v1195 = vunpack.c.l.b16 %v1161
    %v1196 = vunpack.c.l.b16 %v1162
    %v1197 = vpack.c.b16 %v1182, %v1181
    %v1198 = vpack.c.b16 %v1184, %v1183
    %v1199 = vpack.c.b16 %v1186, %v1185
    %v1200 = vpack.c.b16 %v1188, %v1187
    %v1201 = vpack.c.b16 %v1190, %v1189
    %v1202 = vpack.c.b16 %v1192, %v1191
    %v1203 = vpack.c.b16 %v1194, %v1193
    %v1204 = vpack.c.b16 %v1196, %v1195
    %1213 = vmatpush.bf16.msra.mxu0 %v1204
    %1214 = vmatpush.bf16.msra.mxu0 %v1203
    %1215 = vmatpush.bf16.msra.mxu0 %v1202
    %1216 = vmatpush.bf16.msra.mxu0 %v1201
    %1217 = vmatpush.bf16.msra.mxu0 %v1200
    %1218 = vmatpush.bf16.msra.mxu0 %v1199
    %1219 = vmatpush.bf16.msra.mxu0 %v1198
    %1220 = vmatpush.bf16.msra.mxu0 %v1197
    %1221 = vmatmul.bf16.gmra.mxu0 %v1163
    %v1222 = vpop.f32.mrf.mxu0
    %v1223 = vadd.f32 0.0, %v1222
    %v1224 = vpop.f32.mrf.mxu0
    %1225 = vdwg.mxu0
    %v1226 = vadd.f32 %v1146, %v1223
    %v1227 = vld [vmem:[%s3 + $0x1c0] sm:$0xf]
    %v1228 = vld [vmem:[%s3 + $0x1c4] sm:$0xf]
    %v1229 = vld [vmem:[%s3 + $0x1c8] sm:$0xf]
    %v1230 = vld [vmem:[%s3 + $0x1cc] sm:$0xf]
    %v1231 = vld [vmem:[%s3 + $0x1d0] sm:$0xf]
    %v1232 = vld [vmem:[%s3 + $0x1d4] sm:$0xf]
    %v1233 = vld [vmem:[%s3 + $0x1d8] sm:$0xf]
    %v1234 = vld [vmem:[%s3 + $0x1dc] sm:$0xf]
    %v1235 = vld [vmem:[%s3 + $0x1e0] sm:$0xf]
    %v1236 = vld [vmem:[%s3 + $0x1e4] sm:$0xf]
    %v1237 = vld [vmem:[%s3 + $0x1e8] sm:$0xf]
    %v1238 = vld [vmem:[%s3 + $0x1ec] sm:$0xf]
    %v1239 = vld [vmem:[%s3 + $0x1f0] sm:$0xf]
    %v1240 = vld [vmem:[%s3 + $0x1f4] sm:$0xf]
    %v1241 = vld [vmem:[%s3 + $0x1f8] sm:$0xf]
    %v1242 = vld [vmem:[%s3 + $0x1fc] sm:$0xf]
    %v1243 = vrot.slane %v1082, 3
    %v1261 = vunpack.c.l.b16 %v1227
    %v1262 = vunpack.c.l.b16 %v1228
    %v1263 = vunpack.c.l.b16 %v1229
    %v1264 = vunpack.c.l.b16 %v1230
    %v1265 = vunpack.c.l.b16 %v1231
    %v1266 = vunpack.c.l.b16 %v1232
    %v1267 = vunpack.c.l.b16 %v1233
    %v1268 = vunpack.c.l.b16 %v1234
    %v1269 = vunpack.c.l.b16 %v1235
    %v1270 = vunpack.c.l.b16 %v1236
    %v1271 = vunpack.c.l.b16 %v1237
    %v1272 = vunpack.c.l.b16 %v1238
    %v1273 = vunpack.c.l.b16 %v1239
    %v1274 = vunpack.c.l.b16 %v1240
    %v1275 = vunpack.c.l.b16 %v1241
    %v1276 = vunpack.c.l.b16 %v1242
    %v1277 = vpack.c.b16 %v1262, %v1261
    %v1278 = vpack.c.b16 %v1264, %v1263
    %v1279 = vpack.c.b16 %v1266, %v1265
    %v1280 = vpack.c.b16 %v1268, %v1267
    %v1281 = vpack.c.b16 %v1270, %v1269
    %v1282 = vpack.c.b16 %v1272, %v1271
    %v1283 = vpack.c.b16 %v1274, %v1273
    %v1284 = vpack.c.b16 %v1276, %v1275
    %1293 = vmatpush.bf16.msra.mxu0 %v1284
    %1294 = vmatpush.bf16.msra.mxu0 %v1283
    %1295 = vmatpush.bf16.msra.mxu0 %v1282
    %1296 = vmatpush.bf16.msra.mxu0 %v1281
    %1297 = vmatpush.bf16.msra.mxu0 %v1280
    %1298 = vmatpush.bf16.msra.mxu0 %v1279
    %1299 = vmatpush.bf16.msra.mxu0 %v1278
    %1300 = vmatpush.bf16.msra.mxu0 %v1277
    %1301 = vmatmul.bf16.gmra.mxu0 %v1243
    %v1302 = vpop.f32.mrf.mxu0
    %v1303 = vadd.f32 0.0, %v1302
    %v1304 = vpop.f32.mrf.mxu0
    %1305 = vdwg.mxu0
    %v1306 = vadd.f32 %v1226, %v1303
    %1307 = vst [vmem:[#allocation2] sm:$0x3] %v1306
    // Predicated region
    $region22: #{cnn_forward.1} parent=1 // pred_check
      _
    $region23: #{cnn_forward.1} parent=1 // pred_check_branch
      %1309 = sbr.rel (0) target = $region25
    $region24: #{cnn_forward.1} parent=1 // pred_region
      %1311 = vsyncadd [#allocation3], 0
      %s1313 = sshll.u32 [#allocation2], 4
      %s1314 = int_to_ptr.vmem [resolvable:$true] %s1313
      %s1315 = sshll.u32 %s5, 4
      %s1316 = int_to_ptr.hbm [resolvable:$true] %s1315
      %1318 = dma.vmem_to_hbm [thread:$0]  %s1314, 32, %s1316, [#allocation3]
    $region25: #{cnn_forward.1} parent=1 // pred_fallthru
      _
    // Predicated region
    $region26: #{cnn_forward.1} parent=1 // pred_check
      _
    $region27: #{cnn_forward.1} parent=1 // pred_check_branch
      %1320 = sbr.rel (0) target = $region29
    $region28: #{cnn_forward.1} parent=1 // pred_region
      %1322 = dma.done [#allocation3], 32
    $region29: #{cnn_forward.1} parent=1 // pred_fallthru
      _
    %1323 = vsyncpa [#allocation3], 1

</llo_original>
